<compile_context>
chip_gen: v7x
topology: tpu7x:2x2x1
jax: 0.10.0
libtpu: 0.0.40
codegen_flags: <defaults>
</compile_context>

<pallas_src>
import functools

import jax
import jax.numpy as jnp
from jax.experimental import pallas as pl
from jax.experimental.pallas import tpu as pltpu


def _round_up(a: int, b: int) -> int:
    return ((a + b - 1) // b) * b


def _patch_embed_kernel(x_ref, w_ref, b_ref, g_ref, beta_ref, o_ref, *, eps, e_valid):
    # x_ref:    (tm, K_pad)     bf16 patches          (K padded with zero columns)
    # w_ref:    (K_pad, E_pad)  bf16 projection weight (zero-padded rows/cols)
    # b_ref:    (1, E_pad)      f32 projection bias   (zero in padded columns)
    # g_ref:    (1, E_pad)      f32 LayerNorm gamma   (zero in padded columns)
    # beta_ref: (1, E_pad)      f32 LayerNorm beta    (zero in padded columns)
    # o_ref:    (tm, E_pad)     bf16 output
    acc = jnp.dot(x_ref[...], w_ref[...], preferred_element_type=jnp.float32)
    acc = acc + b_ref[...]

    inv_e = 1.0 / e_valid
    # Padded E columns of acc are exactly zero (zero weight cols + zero bias), so the
    # full-row sums equal the sums over the real E columns -- no mask needed.
    mean = jnp.sum(acc, axis=-1, keepdims=True) * inv_e
    mean_sq = jnp.sum(acc * acc, axis=-1, keepdims=True) * inv_e
    var = jnp.maximum(mean_sq - mean * mean, 0.0)        # biased, like nn.LayerNorm
    xn = (acc - mean) * jax.lax.rsqrt(var + eps)
    o_ref[...] = (xn * g_ref[...] + beta_ref[...]).astype(o_ref.dtype)


def patch_embed_forward(x, conv_w, conv_b, ln_g, ln_b, *, patch_size, eps=1e-5,
                        tm=512, out_dtype=jnp.bfloat16):
    """x: (B, C, H, W). Returns (tokens (B, num_patches, E) in out_dtype, (Hp, Wp))."""
    B, C, H, W = x.shape
    ph, pw = patch_size
    assert H % ph == 0 and W % pw == 0
    Hp, Wp = H // ph, W // pw
    E = conv_w.shape[0]
    K = C * ph * pw
    M = B * Hp * Wp

    E_pad = _round_up(E, 128)   # lane-dense (unmasked) output stores
    K_pad = _round_up(K, 128)   # full MXU contraction passes; zero padding is exact

    # ---- M tiling --------------------------------------------------------------
    if M <= tm:
        # Small problem: split into two tiles when possible so both v7x TensorCores
        # get work (grid >= 2); truly tiny problems get a single sublane-aligned tile.
        tm = _round_up(pl.cdiv(M, 2), 8) if M >= 16 else _round_up(M, 8)
    grid = pl.cdiv(M, tm)
    # Rebalance: smallest multiple-of-8 tile that still covers M in `grid` steps, so
    # the ragged last tile (handled by Pallas masking, no HBM pad copy) wastes little.
    tm = _round_up(pl.cdiv(M, grid), 8)
    grid = pl.cdiv(M, tm)

    # ---- operand prep (glue; the patches producer may be fused into the call) ---
    xb = x.astype(jnp.bfloat16)
    patches = xb.reshape(B, C, Hp, ph, Wp, pw).transpose(0, 2, 4, 1, 3, 5).reshape(M, K)
    if K_pad != K:
        patches = jnp.pad(patches, ((0, 0), (0, K_pad - K)))

    # Conv weight (E, C, ph, pw) -> (K_pad, E_pad), bf16, zero-padded.
    w_mat = conv_w.reshape(E, K).T.astype(jnp.bfloat16)
    if K_pad != K or E_pad != E:
        w_mat = jnp.pad(w_mat, ((0, K_pad - K), (0, E_pad - E)))

    def _pad_vec(v):
        v = v.astype(jnp.float32).reshape(1, E)
        return jnp.pad(v, ((0, 0), (0, E_pad - E))) if E_pad != E else v

    b2, g2, beta2 = _pad_vec(conv_b), _pad_vec(ln_g), _pad_vec(ln_b)

    # ---- VMEM budget & cost hint -------------------------------------------------
    out_bytes = jnp.dtype(out_dtype).itemsize
    vmem_est = 2 * (tm * K_pad * 2 + K_pad * E_pad * 2 + tm * E_pad * out_bytes
                    + 3 * E_pad * 4)
    vmem_limit = int(min(48 * 1024 * 1024, max(2 * vmem_est, 16 * 1024 * 1024)))

    cost = pl.CostEstimate(
        flops=2 * M * K_pad * E_pad,
        transcendentals=M,  # one rsqrt per row
        bytes_accessed=(M * K_pad * 2 + K_pad * E_pad * 2 + 3 * E_pad * 4
                        + M * E_pad * out_bytes),
    )

    out = pl.pallas_call(
        functools.partial(_patch_embed_kernel, eps=float(eps), e_valid=E),
        out_shape=jax.ShapeDtypeStruct((M, E_pad), out_dtype),
        grid_spec=pltpu.PrefetchScalarGridSpec(
            num_scalar_prefetch=0,
            grid=(grid,),
            in_specs=[
                pl.BlockSpec((tm, K_pad), lambda i: (i, 0)),
                pl.BlockSpec((K_pad, E_pad), lambda i: (0, 0)),
                pl.BlockSpec((1, E_pad), lambda i: (0, 0)),
                pl.BlockSpec((1, E_pad), lambda i: (0, 0)),
                pl.BlockSpec((1, E_pad), lambda i: (0, 0)),
            ],
            out_specs=pl.BlockSpec((tm, E_pad), lambda i: (i, 0)),
        ),
        compiler_params=pltpu.CompilerParams(
            dimension_semantics=("parallel",),  # shards M tiles across TCs on v7x
            vmem_limit_bytes=vmem_limit,
            # let XLA fuse the patchify reshape/transpose/cast into the patches operand
            allow_input_fusion=[True, False, False, False, False],
        ),
        cost_estimate=cost,
    )(patches, w_mat, b2, g2, beta2)

    tokens = out[:, :E] if E_pad != E else out
    return tokens.reshape(B, Hp * Wp, E), (Hp, Wp)


def _reference(x, conv_w, conv_b, ln_g, ln_b, patch_size, eps=1e-5):
    # Pure-JAX f32 reference mirroring the PyTorch forward.
    y = jax.lax.conv_general_dilated(
        x, conv_w, window_strides=patch_size, padding="VALID",
        dimension_numbers=("NCHW", "OIHW", "NCHW"),
    ) + conv_b.reshape(1, -1, 1, 1)
    B, E, Hp, Wp = y.shape
    y = y.reshape(B, E, Hp * Wp).transpose(0, 2, 1)  # flatten(2).transpose(1,2)
    mu = y.mean(-1, keepdims=True)
    var = ((y - mu) ** 2).mean(-1, keepdims=True)
    return (y - mu) / jnp.sqrt(var + eps) * ln_g + ln_b


if __name__ == "__main__":
    # Small config: img_size=16, patch_size=4, in_chans=4, embed_dim=32, batch=2.
    B, C, IMG, P, E = 2, 4, 16, 4, 32
    key = jax.random.PRNGKey(0)
    kx, kw, kb, kg, kbb = jax.random.split(key, 5)

    x = jax.random.normal(kx, (B, C, IMG, IMG), dtype=jnp.float32)
    conv_w = jax.random.normal(kw, (E, C, P, P), dtype=jnp.float32) * 0.02
    conv_b = jax.random.normal(kb, (E,), dtype=jnp.float32) * 0.02
    ln_g = jnp.ones((E,), dtype=jnp.float32)
    ln_b = jnp.zeros((E,), dtype=jnp.float32)

    tokens, (Hp, Wp) = patch_embed_forward(
        x, conv_w, conv_b, ln_g, ln_b, patch_size=(P, P))
    tokens = jax.block_until_ready(tokens)

    ref = _reference(x, conv_w, conv_b, ln_g, ln_b, (P, P))
    assert tokens.shape == (B, (IMG // P) * (IMG // P), E)
    assert (Hp, Wp) == (IMG // P, IMG // P)
    # bf16 MXU inputs + bf16 output store with f32 accumulation/LN -> loose tolerance
    # vs. the f32 reference.
    assert jnp.allclose(tokens.astype(jnp.float32), ref, atol=3e-2, rtol=3e-2), \
        float(jnp.max(jnp.abs(tokens.astype(jnp.float32) - ref)))
    print("KERNEL_OK")
</pallas_src>

<mosaic_0001>
module attributes {stable_mosaic.version = 11 : i64} {
  func.func @_patch_embed_kernel(%arg0: i32, %arg1: memref<16x128xbf16, #tpu.memory_space<vmem>>, %arg2: memref<128x128xbf16, #tpu.memory_space<vmem>>, %arg3: memref<1x128xf32, #tpu.memory_space<vmem>>, %arg4: memref<1x128xf32, #tpu.memory_space<vmem>>, %arg5: memref<1x128xf32, #tpu.memory_space<vmem>>, %arg6: memref<16x128xbf16, #tpu.memory_space<vmem>>) attributes {dimension_semantics = [#tpu.dimension_semantics<parallel>], iteration_bounds = array<i64: 2>, scalar_prefetch = 0 : i64, scratch_operands = 0 : i64, tpu.core_type = #tpu.core_type<tc>, window_params = [{transform_indices = @transform_0, window_bounds = array<i64: 16, 128>}, {pipeline_mode = #tpu.pipeline_mode<synchronous>, transform_indices = @transform_1, window_bounds = array<i64: 128, 128>}, {pipeline_mode = #tpu.pipeline_mode<synchronous>, transform_indices = @transform_2, window_bounds = array<i64: 1, 128>}, {pipeline_mode = #tpu.pipeline_mode<synchronous>, transform_indices = @transform_3, window_bounds = array<i64: 1, 128>}, {pipeline_mode = #tpu.pipeline_mode<synchronous>, transform_indices = @transform_4, window_bounds = array<i64: 1, 128>}, {transform_indices = @transform_5, window_bounds = array<i64: 16, 128>}]} {
    %c0 = arith.constant 0 : index
    %c0_0 = arith.constant 0 : index
    %0 = vector.load %arg1[%c0, %c0_0] : memref<16x128xbf16, #tpu.memory_space<vmem>>, vector<16x128xbf16>
    %c0_1 = arith.constant 0 : index
    %c0_2 = arith.constant 0 : index
    %1 = vector.load %arg2[%c0_1, %c0_2] : memref<128x128xbf16, #tpu.memory_space<vmem>>, vector<128x128xbf16>
    %cst = arith.constant dense<0.000000e+00> : vector<16x128xf32>
    %2 = tpu.matmul %0, %1, %cst {dimension_numbers = #tpu.dot_dimension_numbers<[1], [0], [0], [1], [0, 0, 1, 1], [], []>} : vector<16x128xbf16>, vector<128x128xbf16>, vector<16x128xf32> -> vector<16x128xf32>
    %c0_3 = arith.constant 0 : index
    %c0_4 = arith.constant 0 : index
    %3 = vector.load %arg3[%c0_3, %c0_4] : memref<1x128xf32, #tpu.memory_space<vmem>>, vector<1x128xf32>
    %4 = vector.broadcast %3 : vector<1x128xf32> to vector<16x128xf32>
    %5 = arith.addf %2, %4 : vector<16x128xf32>
    %cst_5 = arith.constant dense<0.000000e+00> : vector<16xf32>
    %6 = vector.multi_reduction <add>, %5, %cst_5 [1] : vector<16x128xf32> to vector<16xf32>
    %7 = vector.shape_cast %6 : vector<16xf32> to vector<16x1xf32>
    %cst_6 = arith.constant 3.125000e-02 : f32
    %8 = vector.broadcast %cst_6 : f32 to vector<16x1xf32>
    %9 = arith.mulf %7, %8 : vector<16x1xf32>
    %10 = arith.mulf %5, %5 : vector<16x128xf32>
    %cst_7 = arith.constant dense<0.000000e+00> : vector<16xf32>
    %11 = vector.multi_reduction <add>, %10, %cst_7 [1] : vector<16x128xf32> to vector<16xf32>
    %12 = vector.shape_cast %11 : vector<16xf32> to vector<16x1xf32>
    %cst_8 = arith.constant 3.125000e-02 : f32
    %13 = vector.broadcast %cst_8 : f32 to vector<16x1xf32>
    %14 = arith.mulf %12, %13 : vector<16x1xf32>
    %15 = arith.mulf %9, %9 : vector<16x1xf32>
    %16 = arith.subf %14, %15 : vector<16x1xf32>
    %cst_9 = arith.constant 0.000000e+00 : f32
    %17 = vector.broadcast %cst_9 : f32 to vector<16x1xf32>
    %18 = arith.maximumf %16, %17 : vector<16x1xf32>
    %19 = vector.broadcast %9 : vector<16x1xf32> to vector<16x128xf32>
    %20 = arith.subf %5, %19 : vector<16x128xf32>
    %cst_10 = arith.constant 9.99999974E-6 : f32
    %21 = vector.broadcast %cst_10 : f32 to vector<16x1xf32>
    %22 = arith.addf %18, %21 : vector<16x1xf32>
    %23 = math.rsqrt %22 : vector<16x1xf32>
    %24 = vector.broadcast %23 : vector<16x1xf32> to vector<16x128xf32>
    %25 = arith.mulf %20, %24 : vector<16x128xf32>
    %c0_11 = arith.constant 0 : index
    %c0_12 = arith.constant 0 : index
    %26 = vector.load %arg4[%c0_11, %c0_12] : memref<1x128xf32, #tpu.memory_space<vmem>>, vector<1x128xf32>
    %27 = vector.broadcast %26 : vector<1x128xf32> to vector<16x128xf32>
    %28 = arith.mulf %25, %27 : vector<16x128xf32>
    %c0_13 = arith.constant 0 : index
    %c0_14 = arith.constant 0 : index
    %29 = vector.load %arg5[%c0_13, %c0_14] : memref<1x128xf32, #tpu.memory_space<vmem>>, vector<1x128xf32>
    %30 = vector.broadcast %29 : vector<1x128xf32> to vector<16x128xf32>
    %31 = arith.addf %28, %30 : vector<16x128xf32>
    %32 = arith.truncf %31 : vector<16x128xf32> to vector<16x128xbf16>
    %c0_15 = arith.constant 0 : index
    %c0_16 = arith.constant 0 : index
    %33 = vector.load %arg6[%c0_15, %c0_16] : memref<16x128xbf16, #tpu.memory_space<vmem>>, vector<16x128xbf16>
    tpu.vector_store %arg6[%c0_15, %c0_16], %32 {strides = array<i32>} : memref<16x128xbf16, #tpu.memory_space<vmem>>, vector<16x128xbf16>,
    return
  }
  func.func @transform_0(%arg0: i32) -> (i32, i32) {
    %c0_i32 = arith.constant 0 : i32
    %c0_i32_0 = arith.constant 0 : i32
    return %arg0, %c0_i32 : i32, i32
  }
  func.func @transform_1(%arg0: i32) -> (i32, i32) {
    %c0_i32 = arith.constant 0 : i32
    %c0_i32_0 = arith.constant 0 : i32
    %c0_i32_1 = arith.constant 0 : i32
    return %c0_i32, %c0_i32_0 : i32, i32
  }
  func.func @transform_2(%arg0: i32) -> (i32, i32) {
    %c0_i32 = arith.constant 0 : i32
    %c0_i32_0 = arith.constant 0 : i32
    %c0_i32_1 = arith.constant 0 : i32
    return %c0_i32, %c0_i32_0 : i32, i32
  }
  func.func @transform_3(%arg0: i32) -> (i32, i32) {
    %c0_i32 = arith.constant 0 : i32
    %c0_i32_0 = arith.constant 0 : i32
    %c0_i32_1 = arith.constant 0 : i32
    return %c0_i32, %c0_i32_0 : i32, i32
  }
  func.func @transform_4(%arg0: i32) -> (i32, i32) {
    %c0_i32 = arith.constant 0 : i32
    %c0_i32_0 = arith.constant 0 : i32
    %c0_i32_1 = arith.constant 0 : i32
    return %c0_i32, %c0_i32_0 : i32, i32
  }
  func.func @transform_5(%arg0: i32) -> (i32, i32) {
    %c0_i32 = arith.constant 0 : i32
    %c0_i32_0 = arith.constant 0 : i32
    return %arg0, %c0_i32 : i32, i32
  }
}

</mosaic_0001>

<llo_original>
// kernel: tpu_custom_call.1
$region0: #{tpu_custom_call.1}
  #allocation0 [shape = 'u32[]', space=smem, size = 0x4, offset = 0x4, fixed_abs, tag = 'smem constant byte address 0x4 - core index']
  #allocation1 [shape = 'u32[144,128]{1,0:T(1,128)}', space=vmem, size = 0x12000, scoped, tag = 'internal scratch']
  %s0 = inlined_call_operand.hbm [shape: bf16[32,128], index: 0, kind: input, shape index: {}]
  %s1 = inlined_call_operand.hbm [shape: bf16[128,128], index: 1, kind: input, shape index: {}]
  %s2 = inlined_call_operand.vmem [shape: f32[1,128], index: 2, kind: input, shape index: {}]
  %s3 = inlined_call_operand.vmem [shape: f32[1,128], index: 3, kind: input, shape index: {}]
  %s4 = inlined_call_operand.vmem [shape: f32[1,128], index: 4, kind: input, shape index: {}]
  %s5 = inlined_call_operand.hbm [shape: bf16[32,128], index: 5, kind: output, shape index: {}]
  %s6 = sld [smem:[#allocation0]]
  $region61: #{tpu_custom_call.1} parent=0
    _
  %s8 = ssub.s32 1, %s6
  %s9 = scalar_select 0, %s8, %s6
  $region1: #{tpu_custom_call.1} parent=0
    #allocation2 [shape = 'u8[8192]{0}', space=vmem, size = 0x2000, scoped, tag = 'input window, operand 0']
    #allocation3 [shape = 's32[2]{0}', space=sflag, size = 0x8, scoped, tag = 'scoped memory for tpu_custom_call.1']
    #allocation4 [shape = 's32[2]{0}', space=sflag, size = 0x8, scoped, tag = 'scoped memory for tpu_custom_call.1']
    #allocation5 [shape = 'u8[32768]{0}', space=vmem, size = 0x8000, scoped, tag = 'input window, operand 1, single buffered']
    #allocation6 [shape = 's32[1]{0}', space=sflag, size = 0x4, scoped, tag = 'scoped memory for tpu_custom_call.1']
    #allocation7 [shape = 'u8[8192]{0}', space=vmem, size = 0x2000, scoped, tag = 'output window, operand 0']
    %10 = vsyncpa [#allocation3], 0
    %s11 = scalar_lea.sflag [#allocation3], 1
    %12 = vsyncpa %s11, 0
    %13 = vsyncpa [#allocation6], 0
    %14 = vsyncpa [#allocation4], 0
    %s15 = scalar_lea.sflag [#allocation4], 1
    %16 = vsyncpa %s15, 0
    loop: start=0, step=1, limit=4
    $region2: #{tpu_custom_call.1} parent=1 // loop_pre_header
      _
    $region3: #{tpu_custom_call.1} parent=1 // loop_header
      %s18 = sphi 0, %s22
      %p19 = scmp.ge.s32.totalorder %s18, 4
      %s28 = sphi 0, %s30
      %s31 = sphi 0, %s28
      %s32 = sphi 0, %s31
      %s48 = sphi 0, %s32
      %s52 = sphi 0, %s52
      %s54 = sphi 0, %s52
      %s55 = sphi 0, %s54
      %s69 = sphi 0, %s55
      %s73 = sphi 0, %s73
      %s75 = sphi 0, %s73
      %s76 = sphi 0, %s75
      %s90 = sphi 0, %s76
      %s94 = sphi 0, %s94
      %s96 = sphi 0, %s94
      %s97 = sphi 0, %s96
      %s111 = sphi 0, %s97
      %s115 = sphi 0, %s115
      %s117 = sphi 0, %s115
      %s118 = sphi 0, %s117
      %s132 = sphi 0, %s118
      %s138 = sphi 0, %s140
      %s141 = sphi 0, %s138
      %s142 = sphi 0, %s141
      %s158 = sphi 0, %s142
    $region4: #{tpu_custom_call.1} parent=1 // loop_header_branch
      %21 = sbr.rel (%p19) target = $region8
    $region5: #{tpu_custom_call.1} parent=1 // loop_body
      %s23 = ssub.s32 %s18, 1
      %s24 = ssub.s32 %s18, 2
      %s25 = sadd.s32 %s18, 1
      %s26 = ssub.s32 %s18, %s25
      %p27 = scmp.eq.s32.totalorder %s26, 0
      %s29 = sadd.s32 %s28, 1
      %s30 = scalar_select %p27, %s28, %s29
      %p33 = pneg %p27
      %p34 = scmp.eq.s32.totalorder %s18, 1
      %p35 = por %p33, %p34
      %p36 = scmp.ne.s32.totalorder %s28, %s31
      %p37 = scmp.eq.s32.totalorder %s18, 0
      %p38 = por %p36, %p37
      %p39 = scmp.ne.s32.totalorder %s28, %s31
      %p40 = scmp.eq.s32.totalorder %s23, 1
      %p41 = por %p39, %p40
      %p42 = scmp.ne.s32.totalorder %s31, %s32
      %p43 = scmp.eq.s32.totalorder %s23, 0
      %p44 = por %p42, %p43
      %p45 = scmp.ne.s32.totalorder %s31, %s32
      %p46 = scmp.eq.s32.totalorder %s24, 1
      %p47 = por %p45, %p46
      %p49 = scmp.ne.s32.totalorder %s32, %s48
      %p50 = scmp.eq.s32.totalorder %s24, 0
      %p51 = por %p49, %p50
      %s53 = sadd.s32 %s52, 1
      %p56 = scmp.eq.s32.totalorder %s18, 1
      %p57 = scmp.ne.s32.totalorder %s52, %s54
      %p58 = scmp.eq.s32.totalorder %s18, 0
      %p59 = por %p57, %p58
      %p60 = scmp.ne.s32.totalorder %s52, %s54
      %p61 = scmp.eq.s32.totalorder %s23, 1
      %p62 = por %p60, %p61
      %p63 = scmp.ne.s32.totalorder %s54, %s55
      %p64 = scmp.eq.s32.totalorder %s23, 0
      %p65 = por %p63, %p64
      %p66 = scmp.ne.s32.totalorder %s54, %s55
      %p67 = scmp.eq.s32.totalorder %s24, 1
      %p68 = por %p66, %p67
      %p70 = scmp.ne.s32.totalorder %s55, %s69
      %p71 = scmp.eq.s32.totalorder %s24, 0
      %p72 = por %p70, %p71
      %s74 = sadd.s32 %s73, 1
      %p77 = scmp.eq.s32.totalorder %s18, 1
      %p78 = scmp.ne.s32.totalorder %s73, %s75
      %p79 = scmp.eq.s32.totalorder %s18, 0
      %p80 = por %p78, %p79
      %p81 = scmp.ne.s32.totalorder %s73, %s75
      %p82 = scmp.eq.s32.totalorder %s23, 1
      %p83 = por %p81, %p82
      %p84 = scmp.ne.s32.totalorder %s75, %s76
      %p85 = scmp.eq.s32.totalorder %s23, 0
      %p86 = por %p84, %p85
      %p87 = scmp.ne.s32.totalorder %s75, %s76
      %p88 = scmp.eq.s32.totalorder %s24, 1
      %p89 = por %p87, %p88
      %p91 = scmp.ne.s32.totalorder %s76, %s90
      %p92 = scmp.eq.s32.totalorder %s24, 0
      %p93 = por %p91, %p92
      %s95 = sadd.s32 %s94, 1
      %p98 = scmp.eq.s32.totalorder %s18, 1
      %p99 = scmp.ne.s32.totalorder %s94, %s96
      %p100 = scmp.eq.s32.totalorder %s18, 0
      %p101 = por %p99, %p100
      %p102 = scmp.ne.s32.totalorder %s94, %s96
      %p103 = scmp.eq.s32.totalorder %s23, 1
      %p104 = por %p102, %p103
      %p105 = scmp.ne.s32.totalorder %s96, %s97
      %p106 = scmp.eq.s32.totalorder %s23, 0
      %p107 = por %p105, %p106
      %p108 = scmp.ne.s32.totalorder %s96, %s97
      %p109 = scmp.eq.s32.totalorder %s24, 1
      %p110 = por %p108, %p109
      %p112 = scmp.ne.s32.totalorder %s97, %s111
      %p113 = scmp.eq.s32.totalorder %s24, 0
      %p114 = por %p112, %p113
      %s116 = sadd.s32 %s115, 1
      %p119 = scmp.eq.s32.totalorder %s18, 1
      %p120 = scmp.ne.s32.totalorder %s115, %s117
      %p121 = scmp.eq.s32.totalorder %s18, 0
      %p122 = por %p120, %p121
      %p123 = scmp.ne.s32.totalorder %s115, %s117
      %p124 = scmp.eq.s32.totalorder %s23, 1
      %p125 = por %p123, %p124
      %p126 = scmp.ne.s32.totalorder %s117, %s118
      %p127 = scmp.eq.s32.totalorder %s23, 0
      %p128 = por %p126, %p127
      %p129 = scmp.ne.s32.totalorder %s117, %s118
      %p130 = scmp.eq.s32.totalorder %s24, 1
      %p131 = por %p129, %p130
      %p133 = scmp.ne.s32.totalorder %s118, %s132
      %p134 = scmp.eq.s32.totalorder %s24, 0
      %p135 = por %p133, %p134
      %s136 = ssub.s32 %s18, %s25
      %p137 = scmp.eq.s32.totalorder %s136, 0
      %s139 = sadd.s32 %s138, 1
      %s140 = scalar_select %p137, %s138, %s139
      %p143 = pneg %p137
      %p144 = scmp.eq.s32.totalorder %s18, 1
      %p145 = por %p143, %p144
      %p146 = scmp.ne.s32.totalorder %s138, %s141
      %p147 = scmp.eq.s32.totalorder %s18, 0
      %p148 = por %p146, %p147
      %p149 = scmp.ne.s32.totalorder %s138, %s141
      %p150 = scmp.eq.s32.totalorder %s23, 1
      %p151 = por %p149, %p150
      %p152 = scmp.ne.s32.totalorder %s141, %s142
      %p153 = scmp.eq.s32.totalorder %s23, 0
      %p154 = por %p152, %p153
      %p155 = scmp.ne.s32.totalorder %s141, %s142
      %p156 = scmp.eq.s32.totalorder %s24, 1
      %p157 = por %p155, %p156
      %p159 = scmp.ne.s32.totalorder %s142, %s158
      %p160 = scmp.eq.s32.totalorder %s24, 0
      %p161 = por %p159, %p160
      %p162 = scmp.le.s32.totalorder 1, %s18
      %p163 = scmp.lt.s32.totalorder %s18, 3
      %p164 = pnand %p162, %p163
      %p165 = pneg %p164
      // Predicated region
      $region9: #{tpu_custom_call.1} parent=5 // pred_check
        _
      $region10: #{tpu_custom_call.1} parent=5 // pred_check_branch
        %167 = sbr.rel (%p164) target = $region12
      $region11: #{tpu_custom_call.1} parent=5 // pred_region
        %s168 = ssub.s32 %s18, 1
        // Predicated region
        $region13: #{tpu_custom_call.1} parent=11 // pred_check
          %p169 = pneg %p65
        $region14: #{tpu_custom_call.1} parent=11 // pred_check_branch
          %171 = sbr.rel (%p169) target = $region16
        $region15: #{tpu_custom_call.1} parent=11 // pred_region
          %s173 = ssub.s32 1024, 1024
          %174 = vsyncadd [#allocation6], %s173
          %s175 = sshll.u32 [#allocation5], 4
          %s176 = int_to_ptr.vmem [resolvable:$true] %s175
          %181 = dma.hbm_to_vmem [thread:$0]  %s1, 1024, %s176, [#allocation6], 64, 64, 4
        $region16: #{tpu_custom_call.1} parent=11 // pred_fallthru
          _
        // Predicated region
        $region17: #{tpu_custom_call.1} parent=11 // pred_check
          %p182 = pneg %p86
        $region18: #{tpu_custom_call.1} parent=11 // pred_check_branch
          %184 = sbr.rel (%p182) target = $region20
        $region19: #{tpu_custom_call.1} parent=11 // pred_region
          _
        $region20: #{tpu_custom_call.1} parent=11 // pred_fallthru
          _
        // Predicated region
        $region21: #{tpu_custom_call.1} parent=11 // pred_check
          %p185 = pneg %p107
        $region22: #{tpu_custom_call.1} parent=11 // pred_check_branch
          %187 = sbr.rel (%p185) target = $region24
        $region23: #{tpu_custom_call.1} parent=11 // pred_region
          _
        $region24: #{tpu_custom_call.1} parent=11 // pred_fallthru
          _
        // Predicated region
        $region25: #{tpu_custom_call.1} parent=11 // pred_check
          %p188 = pneg %p128
        $region26: #{tpu_custom_call.1} parent=11 // pred_check_branch
          %190 = sbr.rel (%p188) target = $region28
        $region27: #{tpu_custom_call.1} parent=11 // pred_region
          _
        $region28: #{tpu_custom_call.1} parent=11 // pred_fallthru
          _
      $region12: #{tpu_custom_call.1} parent=5 // pred_fallthru
        _
      %p191 = scmp.lt.s32.totalorder %s18, 2
      // Predicated region
      $region29: #{tpu_custom_call.1} parent=5 // pred_check
        %p192 = pneg %p191
      $region30: #{tpu_custom_call.1} parent=5 // pred_check_branch
        %194 = sbr.rel (%p192) target = $region32
      $region31: #{tpu_custom_call.1} parent=5 // pred_region
        // Predicated region
        $region33: #{tpu_custom_call.1} parent=31 // pred_check
          %p195 = pneg %p38
        $region34: #{tpu_custom_call.1} parent=31 // pred_check_branch
          %197 = sbr.rel (%p195) target = $region36
        $region35: #{tpu_custom_call.1} parent=31 // pred_region
          %s198 = sand.u32 %s28, 1
          %s199 = scalar_lea.sflag [#allocation3], %s198
          %s200 = sand.u32 %s28, 1
          %s201 = smul.addr %s200, 8
          %s202 = scalar_lea.vmem [#allocation2], %s201
          %s203 = smul.u32 2, %s18
          %s205 = ssub.s32 128, 128
          %206 = vsyncadd %s199, %s205
          %s207 = smul.addr %s203, 64
          %s208 = scalar_lea.hbm %s0, %s207
          %s209 = sshll.u32 %s202, 4
          %s210 = int_to_ptr.vmem [resolvable:$true] %s209
          %215 = dma.hbm_to_vmem [thread:$0]  %s208, 128, %s210, %s199, 64, 64, 4
        $region36: #{tpu_custom_call.1} parent=31 // pred_fallthru
          _
      $region32: #{tpu_custom_call.1} parent=5 // pred_fallthru
        _
      %p216 = scmp.le.s32.totalorder 1, %s18
      %p217 = scmp.lt.s32.totalorder %s18, 3
      %p218 = pnand %p216, %p217
      %p219 = pneg %p218
      // Predicated region
      $region37: #{tpu_custom_call.1} parent=5 // pred_check
        _
      $region38: #{tpu_custom_call.1} parent=5 // pred_check_branch
        %221 = sbr.rel (%p218) target = $region40
      $region39: #{tpu_custom_call.1} parent=5 // pred_region
        %s222 = ssub.s32 %s18, 1
        %s223 = sand.u32 %s31, 1
        %s224 = scalar_lea.sflag [#allocation3], %s223
        %s225 = sand.u32 %s31, 1
        %s226 = smul.addr %s225, 8
        %s227 = scalar_lea.vmem [#allocation2], %s226
        // Predicated region
        $region41: #{tpu_custom_call.1} parent=39 // pred_check
          %p228 = pneg %p44
        $region42: #{tpu_custom_call.1} parent=39 // pred_check_branch
          %230 = sbr.rel (%p228) target = $region44
        $region43: #{tpu_custom_call.1} parent=39 // pred_region
          %231 = dma.done %s224, 128
        $region44: #{tpu_custom_call.1} parent=39 // pred_fallthru
          _
        // Predicated region
        $region45: #{tpu_custom_call.1} parent=39 // pred_check
          %p232 = pneg %p65
        $region46: #{tpu_custom_call.1} parent=39 // pred_check_branch
          %234 = sbr.rel (%p232) target = $region48
        $region47: #{tpu_custom_call.1} parent=39 // pred_region
          %235 = dma.done [#allocation6], 1024
        $region48: #{tpu_custom_call.1} parent=39 // pred_fallthru
          _
        %s236 = sand.u32 %s31, 1
        %s237 = scalar_lea.sflag [#allocation3], %s236
        %s238 = sand.u32 %s31, 1
        %s239 = smul.addr %s238, 8
        %s240 = scalar_lea.vmem [#allocation2], %s239
        %p241 = pneg %p44
        %p242 = pneg %p41
        %p243 = pneg %p65
        %p244 = pneg %p62
        %p245 = pneg %p86
        %p246 = pneg %p83
        %p247 = pneg %p107
        %p248 = pneg %p104
        %p249 = pneg %p128
        %p250 = pneg %p125
        %p251 = pneg %p154
        %p252 = pneg %p151
        %s253 = sand.u32 %s141, 1
        %s254 = scalar_lea.sflag [#allocation4], %s253
        %s255 = sand.u32 %s141, 1
        %s256 = smul.addr %s255, 8
        %s257 = scalar_lea.vmem [#allocation7], %s256
        %s258 = smul.u32 2, %s23
        %s259 = smul.u32 2, %s23
        %v261 = vld [vmem:[%s227] sm:$0xf]
        %v262 = vld [vmem:[%s227 + $0x4] sm:$0xf]
        %v263 = vld [vmem:[#allocation5] sm:$0xf]
        %v264 = vld [vmem:[#allocation5 + $0x4] sm:$0xf]
        %v265 = vld [vmem:[#allocation5 + $0x8] sm:$0xf]
        %v266 = vld [vmem:[#allocation5 + $0xc] sm:$0xf]
        %v267 = vld [vmem:[#allocation5 + $0x10] sm:$0xf]
        %v268 = vld [vmem:[#allocation5 + $0x14] sm:$0xf]
        %v269 = vld [vmem:[#allocation5 + $0x18] sm:$0xf]
        %v270 = vld [vmem:[#allocation5 + $0x1c] sm:$0xf]
        %v271 = vld [vmem:[#allocation5 + $0x20] sm:$0xf]
        %v272 = vld [vmem:[#allocation5 + $0x24] sm:$0xf]
        %v273 = vld [vmem:[#allocation5 + $0x28] sm:$0xf]
        %v274 = vld [vmem:[#allocation5 + $0x2c] sm:$0xf]
        %v275 = vld [vmem:[#allocation5 + $0x30] sm:$0xf]
        %v276 = vld [vmem:[#allocation5 + $0x34] sm:$0xf]
        %v277 = vld [vmem:[#allocation5 + $0x38] sm:$0xf]
        %v278 = vld [vmem:[#allocation5 + $0x3c] sm:$0xf]
        %v279 = vld [vmem:[%s2] sm:$0x1]
        %v281 = vlaneseq
        %v282 = vshrl.u32 %v281, 7
        %v283 = vsub.s32 0, %v282
        %v284 = vrot.slane %v279, %v283
        %v288 = vunpack.c.l.b16 %v261
        %v289 = vunpack.c.l.b16 %v262
        %v290 = vpack.c.b16 %v289, %v288
        %v308 = vunpack.c.l.b16 %v263
        %v309 = vunpack.c.l.b16 %v264
        %v310 = vunpack.c.l.b16 %v265
        %v311 = vunpack.c.l.b16 %v266
        %v312 = vunpack.c.l.b16 %v267
        %v313 = vunpack.c.l.b16 %v268
        %v314 = vunpack.c.l.b16 %v269
        %v315 = vunpack.c.l.b16 %v270
        %v316 = vunpack.c.l.b16 %v271
        %v317 = vunpack.c.l.b16 %v272
        %v318 = vunpack.c.l.b16 %v273
        %v319 = vunpack.c.l.b16 %v274
        %v320 = vunpack.c.l.b16 %v275
        %v321 = vunpack.c.l.b16 %v276
        %v322 = vunpack.c.l.b16 %v277
        %v323 = vunpack.c.l.b16 %v278
        %v324 = vpack.c.b16 %v309, %v308
        %v325 = vpack.c.b16 %v311, %v310
        %v326 = vpack.c.b16 %v313, %v312
        %v327 = vpack.c.b16 %v315, %v314
        %v328 = vpack.c.b16 %v317, %v316
        %v329 = vpack.c.b16 %v319, %v318
        %v330 = vpack.c.b16 %v321, %v320
        %v331 = vpack.c.b16 %v323, %v322
        %340 = vmatprep.subr.bf16.mxu0 0
        %341 = vmatpush1.bf16.msra.mxu0 %v324
        %342 = vmatprep.subr.bf16.mxu0 0
        %343 = vmatpush1.bf16.msra.mxu0 %v325
        %344 = vmatprep.subr.bf16.mxu0 0
        %345 = vmatpush1.bf16.msra.mxu0 %v326
        %346 = vmatprep.subr.bf16.mxu0 0
        %347 = vmatpush1.bf16.msra.mxu0 %v327
        %348 = vmatprep.subr.bf16.mxu0 0
        %349 = vmatpush1.bf16.msra.mxu0 %v328
        %350 = vmatprep.subr.bf16.mxu0 0
        %351 = vmatpush1.bf16.msra.mxu0 %v329
        %352 = vmatprep.subr.bf16.mxu0 0
        %353 = vmatpush1.bf16.msra.mxu0 %v330
        %354 = vmatprep.subr.bf16.mxu0 0
        %355 = vmatpush1.bf16.msra.mxu0 %v331
        %356 = vmatprep.subr.bf16.mxu0 0
        %357 = vmatpush1.bf16.msra.mxu0 0
        %358 = vmatprep.subr.bf16.mxu0 0
        %359 = vmatpush1.bf16.msra.mxu0 0
        %360 = vmatprep.subr.bf16.mxu0 0
        %361 = vmatpush1.bf16.msra.mxu0 0
        %362 = vmatprep.subr.bf16.mxu0 0
        %363 = vmatpush1.bf16.msra.mxu0 0
        %364 = vmatprep.subr.bf16.mxu0 0
        %365 = vmatpush1.bf16.msra.mxu0 0
        %366 = vmatprep.subr.bf16.mxu0 0
        %367 = vmatpush1.bf16.msra.mxu0 0
        %368 = vmatprep.subr.bf16.mxu0 0
        %369 = vmatpush1.bf16.msra.mxu0 0
        %370 = vmatprep.subr.bf16.mxu0 0
        %371 = vmatpush1.bf16.msra.mxu0 0
        %372 = vmatprep.mubr.bf16.mxu0 0
        %373 = vmatmul.mubr.bf16.gmra.mrb[0].mxu0 %v290
        %v374 = vpop.f32.mrb[0].mxu0
        %v375 = vadd.f32 %v284, %v374
        %v376 = vpop.f32.mrb[0].mxu0
        %v377 = vpop.f32.mrb[0].mxu0
        %v378 = vadd.f32 %v284, %v377
        %v379 = vpop.f32.mrb[0].mxu0
        %380 = vdwg.mxu0
        %381 = vadd.xlane.f32.xlu0 %v375
        %v382 = vpop.xlane.xlu0 %381
        %383 = vadd.xlane.f32.xlu0 %v378
        %v384 = vpop.xlane.xlu0 %383
        %v385 = vmul.f32 %v382, 0.03125
        %v386 = vmul.f32 %v384, 0.03125
        %v387 = vmul.f32 %v375, %v375
        %v388 = vmul.f32 %v378, %v378
        %389 = vadd.xlane.f32.xlu0 %v387
        %v390 = vpop.xlane.xlu0 %389
        %391 = vadd.xlane.f32.xlu0 %v388
        %v392 = vpop.xlane.xlu0 %391
        %v393 = vmul.f32 %v390, 0.03125
        %v394 = vmul.f32 %v392, 0.03125
        %v395 = vmul.f32 %v385, %v385
        %v396 = vmul.f32 %v386, %v386
        %v397 = vsub.f32 %v393, %v395
        %v398 = vsub.f32 %v394, %v396
        %v399 = vmax.f32 %v397, 0.0
        %v400 = vmax.f32 %v398, 0.0
        %v401 = vsub.f32 %v375, %v385
        %v402 = vsub.f32 %v378, %v386
        %v403 = vadd.f32 %v399, 1e-05
        %v404 = vadd.f32 %v400, 1e-05
        %v405 = vrsqrt.pop %v403
        %v406 = vrsqrt.pop %v404
        %v407 = vmul.f32 %v401, %v405
        %v408 = vmul.f32 %v402, %v406
        %v409 = vld [vmem:[%s3] sm:$0x1]
        %v411 = vlaneseq
        %v412 = vshrl.u32 %v411, 7
        %v413 = vsub.s32 0, %v412
        %v414 = vrot.slane %v409, %v413
        %v416 = vmul.f32 %v407, %v414
        %v417 = vmul.f32 %v408, %v414
        %v418 = vld [vmem:[%s4] sm:$0x1]
        %v420 = vlaneseq
        %v421 = vshrl.u32 %v420, 7
        %v422 = vsub.s32 0, %v421
        %v423 = vrot.slane %v418, %v422
        %v425 = vadd.f32 %v416, %v423
        %v426 = vadd.f32 %v417, %v423
        %v427 = vpack.c.bf16 %v426, %v425
        %v429 = vunpack.c.l.b16 %v427
        %v430 = vunpack.c.h.b16 %v427
        %v431 = vpack.c.b16 %v429, %v429
        %v432 = vpack.c.b16 %v430, %v430
        %435 = vst [vmem:[%s257] sm:$0xf] %v431
        %436 = vst [vmem:[%s257 + $0x4] sm:$0xf] %v432
        %s437 = sand.u32 %s141, 1
        %s438 = scalar_lea.sflag [#allocation4], %s437
        %s439 = sand.u32 %s141, 1
        %s440 = smul.addr %s439, 8
        %s441 = scalar_lea.vmem [#allocation7], %s440
        // Predicated region
        $region49: #{tpu_custom_call.1} parent=39 // pred_check
          %p442 = pneg %p151
        $region50: #{tpu_custom_call.1} parent=39 // pred_check_branch
          %444 = sbr.rel (%p442) target = $region52
        $region51: #{tpu_custom_call.1} parent=39 // pred_region
          %s445 = smul.u32 2, %s23
          %s447 = ssub.s32 128, 128
          %448 = vsyncadd %s438, %s447
          %s449 = smul.addr %s445, 64
          %s450 = scalar_lea.hbm %s5, %s449
          %s451 = sshll.u32 %s441, 4
          %s452 = int_to_ptr.vmem [resolvable:$true] %s451
          %457 = dma.vmem_to_hbm [thread:$0]  %s452, 128, %s450, %s438, 64, 64, 4
        $region52: #{tpu_custom_call.1} parent=39 // pred_fallthru
          _
      $region40: #{tpu_custom_call.1} parent=5 // pred_fallthru
        _
      %p458 = scmp.le.s32.totalorder 2, %s18
      // Predicated region
      $region53: #{tpu_custom_call.1} parent=5 // pred_check
        %p459 = pneg %p458
      $region54: #{tpu_custom_call.1} parent=5 // pred_check_branch
        %461 = sbr.rel (%p459) target = $region56
      $region55: #{tpu_custom_call.1} parent=5 // pred_region
        %s462 = ssub.s32 %s18, 2
        // Predicated region
        $region57: #{tpu_custom_call.1} parent=55 // pred_check
          %p463 = pneg %p157
        $region58: #{tpu_custom_call.1} parent=55 // pred_check_branch
          %465 = sbr.rel (%p463) target = $region60
        $region59: #{tpu_custom_call.1} parent=55 // pred_region
          %s466 = sand.u32 %s142, 1
          %s467 = scalar_lea.sflag [#allocation4], %s466
          %s468 = sand.u32 %s142, 1
          %s469 = smul.addr %s468, 8
          %s470 = scalar_lea.vmem [#allocation7], %s469
          %471 = dma.done %s467, 128
        $region60: #{tpu_custom_call.1} parent=55 // pred_fallthru
          _
      $region56: #{tpu_custom_call.1} parent=5 // pred_fallthru
        _
    $region6: #{tpu_custom_call.1} parent=1 // loop_footer
      %s22 = sadd.s32 1, %s18
    $region7: #{tpu_custom_call.1} parent=1 // loop_footer_branch
      %17 = sbr.rel target = $region3
    $region8: #{tpu_custom_call.1} parent=1 // loop_exit
      _
    %472 = vsyncpa [#allocation3], 1
    %s473 = scalar_lea.sflag [#allocation3], 1
    %474 = vsyncpa %s473, 1
    %475 = vsyncpa [#allocation6], 1
    %476 = vsyncpa [#allocation4], 1
    %s477 = scalar_lea.sflag [#allocation4], 1
    %478 = vsyncpa %s477, 1

</llo_original>
